<compile_context>
chip_gen: v7x
topology: tpu7x:2x2x1
jax: 0.10.0
libtpu: 0.0.40
codegen_flags: <defaults>
</compile_context>

<pallas_src>
import functools

import jax
import jax.numpy as jnp
from jax.experimental import pallas as pl
from jax.experimental.pallas import tpu as pltpu


# ---------------------------------------------------------------------------
# Kernels
# ---------------------------------------------------------------------------

def _slam_fused_kernel(feat_ref, w1_ref, b1_ref, w2_ref, b2_ref, out_ref):
    """Single streamed input: gate MLP computed directly from the feature rows.

    feat_ref : (TM, HW)    feature rows (input dtype) - only big streamed input
    w1_ref   : (HW, HID)   first Linear weight (resize folded in when needed),
                           kept in the feature dtype so the MXU runs natively
    b1_ref   : (1, HID)    f32
    w2_ref   : (1, HID)    f32 transposed second-linear weight (lane dense)
    b2_ref   : (1,)        f32 scalar in SMEM
    out_ref  : (TM, HW)    input dtype
    """
    feat = feat_ref[...]
    h = jnp.dot(feat, w1_ref[...], preferred_element_type=jnp.float32)
    h = jnp.maximum(h + b1_ref[...], 0.0)
    # Width-1 second Linear: VPU multiply + lane reduction, not a 1-lane matmul.
    s = jnp.sum(h * w2_ref[...], axis=-1, keepdims=True) + b2_ref[0]
    gate = jax.nn.sigmoid(s)                                   # (TM, 1) f32
    out_ref[...] = feat * gate.astype(out_ref.dtype)


def _slam_split_kernel(x_ref, feat_ref, w1_ref, b1_ref, w2_ref, b2_ref,
                       out_ref, gate_ref):
    """Large-HW variant: 2-D grid (i over rows, j over HW tiles).

    The gate is computed once per row-tile (j == 0) from the small resized
    input and cached in VMEM scratch; the remaining j steps only stream
    (TM, THW) feature/output tiles and reuse the cached gate.
    """
    @pl.when(pl.program_id(1) == 0)
    def _():
        x = x_ref[...]
        h = jnp.dot(x, w1_ref[...], preferred_element_type=jnp.float32)
        h = jnp.maximum(h + b1_ref[...], 0.0)
        s = jnp.sum(h * w2_ref[...], axis=-1, keepdims=True) + b2_ref[0]
        gate_ref[...] = jax.nn.sigmoid(s)

    out_ref[...] = feat_ref[...] * gate_ref[...].astype(out_ref.dtype)


# ---------------------------------------------------------------------------
# Bilinear (align_corners=True) resize as separable matmuls
# ---------------------------------------------------------------------------

def _interp_matrix(out_sz, in_sz):
    """(out_sz, in_sz) bilinear weight matrix, align_corners=True semantics."""
    if out_sz == 1 or in_sz == 1:
        mat = jnp.zeros((out_sz, in_sz), jnp.float32)
        return mat.at[:, 0].set(1.0)
    coords = jnp.arange(out_sz, dtype=jnp.float32) * ((in_sz - 1) / (out_sz - 1))
    lo = jnp.floor(coords).astype(jnp.int32)
    hi = jnp.minimum(lo + 1, in_sz - 1)
    frac = coords - lo.astype(jnp.float32)
    rows = jnp.arange(out_sz)
    mat = jnp.zeros((out_sz, in_sz), jnp.float32)
    mat = mat.at[rows, lo].add(1.0 - frac)
    mat = mat.at[rows, hi].add(frac)
    return mat


def _resize_align_corners(feature, out_h, out_w):
    """Separable matmul bilinear resize (align_corners=True), NCHW."""
    _, _, in_h, in_w = feature.shape
    ay = _interp_matrix(out_h, in_h)                            # (out_h, in_h)
    ax = _interp_matrix(out_w, in_w)                            # (out_w, in_w)
    out = jnp.einsum("sh,nchw,tw->ncst", ay, feature.astype(jnp.float32), ax)
    return out.astype(feature.dtype)


# ---------------------------------------------------------------------------
# Generation-aware VMEM / tiling plan
# ---------------------------------------------------------------------------

def _vmem_plan():
    try:
        kind = jax.devices()[0].device_kind.lower()
    except Exception:  # pragma: no cover - defensive only
        kind = ""
    if "v7" in kind:
        # v7x: 64 MiB physical VMEM per TensorCore, 2 TCs per chip.
        return dict(budget=32 << 20, limit_cap=48 << 20, tm_cap=1024,
                    split_cores=True)
    # v5e / v6e: 128 MiB physical VMEM (v5e default scoped limit is only 16 MiB,
    # so we always set vmem_limit_bytes explicitly below).
    return dict(budget=48 << 20, limit_cap=80 << 20, tm_cap=2048,
                split_cores=False)


def _round_rows(t, mult):
    return max(mult, (t // mult) * mult)


# ---------------------------------------------------------------------------
# Forward wrapper
# ---------------------------------------------------------------------------

@functools.partial(jax.jit,
                   static_argnames=("spatial_dim", "force_split",
                                    "max_tile_cols"))
def slam_forward(feature, w1, b1, w2, b2, *, spatial_dim,
                 force_split=False, max_tile_cols=None):
    n, c, h, w = feature.shape
    s2 = spatial_dim * spatial_dim
    hw = h * w
    m = n * c
    hidden = w1.shape[1]
    itemsize = jnp.dtype(feature.dtype).itemsize
    sub = {4: 8, 2: 16, 1: 32}.get(itemsize, 8)     # sublane packing multiple
    plan = _vmem_plan()

    needs_resize = (h != spatial_dim) or (w != spatial_dim)

    # Gate math dtype: stay bf16 on the MXU when the feature is bf16.
    gate_dtype = feature.dtype if feature.dtype == jnp.bfloat16 else jnp.float32
    gate_itemsize = jnp.dtype(gate_dtype).itemsize

    feat_flat = feature.reshape(m, hw)                           # input dtype
    b1f = b1.reshape(1, hidden).astype(jnp.float32)
    w2_row = w2.reshape(1, hidden).astype(jnp.float32)
    b2f = b2.reshape(1).astype(jnp.float32)                      # SMEM scalar

    # Fold (resize ∘ Linear1) into a single (HW, hidden) weight when it fits
    # VMEM with headroom; then the feature is the only big streamed input.
    folded_w_bytes = hw * hidden * gate_itemsize
    use_folded = (not force_split) and (2 * folded_w_bytes <= plan["budget"] // 2)

    if use_folded:
        if needs_resize:
            ay = _interp_matrix(spatial_dim, h)                  # (S, H)
            ax = _interp_matrix(spatial_dim, w)                  # (S, W)
            w1_sq = w1.astype(jnp.float32).reshape(spatial_dim, spatial_dim,
                                                   hidden)
            w1_eff = jnp.einsum("sh,tw,sto->hwo", ay, ax,
                                w1_sq).reshape(hw, hidden)
        else:
            w1_eff = w1.astype(jnp.float32)
        w1_eff = w1_eff.astype(gate_dtype)

        # VMEM accounting: double-buffered feat/out tiles + resident weights
        # + f32 hidden-activation temporaries.
        fixed = 2 * folded_w_bytes + 4 * (2 * hidden * 4 + 1024)
        per_row = 4 * hw * itemsize + 12 * hidden
        avail = max(plan["budget"] - fixed, per_row * sub)
        tm = min(plan["tm_cap"], m, max(sub, avail // per_row))
        if tm < m:
            tm = _round_rows(tm, sub)
        if plan["split_cores"] and tm >= m and m >= 2 * sub:
            tm = _round_rows(-(-m // 2), sub)                    # grid_m >= 2
        grid_m = pl.cdiv(m, tm)

        total = fixed + tm * per_row
        vmem_limit = int(min(plan["limit_cap"],
                             max(int(total * 1.3) + (2 << 20), 32 << 20)))

        cost = pl.CostEstimate(
            flops=2 * m * hw * hidden + 4 * m * hidden + 2 * m * hw,
            transcendentals=m,
            bytes_accessed=2 * m * hw * itemsize + folded_w_bytes,
        )

        out_flat = pl.pallas_call(
            _slam_fused_kernel,
            out_shape=jax.ShapeDtypeStruct((m, hw), feature.dtype),
            grid=(grid_m,),
            in_specs=[
                pl.BlockSpec((tm, hw), lambda i: (i, 0)),        # feature rows
                pl.BlockSpec((hw, hidden), lambda i: (0, 0)),    # w1_eff (resident)
                pl.BlockSpec((1, hidden), lambda i: (0, 0)),     # b1 (resident)
                pl.BlockSpec((1, hidden), lambda i: (0, 0)),     # w2 row (resident)
                pl.BlockSpec(memory_space=pltpu.MemorySpace.SMEM),  # b2 scalar
            ],
            out_specs=pl.BlockSpec((tm, hw), lambda i: (i, 0)),
            compiler_params=pltpu.CompilerParams(
                dimension_semantics=("parallel",),
                vmem_limit_bytes=vmem_limit,
            ),
            cost_estimate=cost,
        )(feat_flat, w1_eff, b1f, w2_row, b2f)
        return out_flat.reshape(n, c, h, w)

    # ------------------------------------------------------------------
    # Large-HW fallback: wrapper-side separable resize + 2-D-grid kernel
    # with a cached per-row gate (computed once at j == 0).
    # ------------------------------------------------------------------
    if needs_resize:
        x = _resize_align_corners(feature, spatial_dim, spatial_dim)
    else:
        x = feature
    x_flat = x.reshape(m, s2)
    w1k = w1.astype(gate_dtype)

    fixed = 2 * (s2 * hidden * gate_itemsize) + 4 * (2 * hidden * 4 + 1024)
    tm = min(plan["tm_cap"], m)
    if tm < m:
        tm = _round_rows(tm, sub)
    if plan["split_cores"] and tm >= m and m >= 2 * sub:
        tm = _round_rows(-(-m // 2), sub)                        # grid_m >= 2

    # Per-row cost independent of the HW tile width: 2x (tm, s2) x buffers,
    # f32 hidden-activation temporaries, (tm, 1) gate scratch.
    row_fixed = 2 * s2 * itemsize + 12 * hidden + 4
    avail = plan["budget"] - fixed - tm * row_fixed
    avail = max(avail, tm * 4 * 128 * itemsize)
    thw = max(128, ((avail // (tm * 4 * itemsize)) // 128) * 128)
    if max_tile_cols is not None:
        thw = min(thw, max(128, (max_tile_cols // 128) * 128))
    if thw >= hw:
        thw = hw                                                 # full extent

    grid_m = pl.cdiv(m, tm)
    grid_hw = pl.cdiv(hw, thw)
    total = fixed + tm * row_fixed + tm * thw * 4 * itemsize
    vmem_limit = int(min(plan["limit_cap"],
                         max(int(total * 1.3) + (2 << 20), 32 << 20)))

    cost = pl.CostEstimate(
        flops=2 * m * s2 * hidden + 4 * m * hidden + 2 * m * hw,
        transcendentals=m,
        bytes_accessed=(m * s2 * itemsize + 2 * m * hw * itemsize
                        + s2 * hidden * gate_itemsize),
    )

    out_flat = pl.pallas_call(
        _slam_split_kernel,
        out_shape=jax.ShapeDtypeStruct((m, hw), feature.dtype),
        grid=(grid_m, grid_hw),
        in_specs=[
            pl.BlockSpec((tm, s2), lambda i, j: (i, 0)),         # resized rows
            pl.BlockSpec((tm, thw), lambda i, j: (i, j)),        # feature tiles
            pl.BlockSpec((s2, hidden), lambda i, j: (0, 0)),     # w1 (resident)
            pl.BlockSpec((1, hidden), lambda i, j: (0, 0)),      # b1 (resident)
            pl.BlockSpec((1, hidden), lambda i, j: (0, 0)),      # w2 row
            pl.BlockSpec(memory_space=pltpu.MemorySpace.SMEM),   # b2 scalar
        ],
        out_specs=pl.BlockSpec((tm, thw), lambda i, j: (i, j)),
        scratch_shapes=[pltpu.VMEM((tm, 1), jnp.float32)],       # cached gate
        compiler_params=pltpu.CompilerParams(
            dimension_semantics=("parallel", "arbitrary"),
            vmem_limit_bytes=vmem_limit,
        ),
        cost_estimate=cost,
    )(x_flat, feat_flat, w1k, b1f, w2_row, b2f)
    return out_flat.reshape(n, c, h, w)


# ---------------------------------------------------------------------------
# Pure-jnp reference mirroring the PyTorch module
# ---------------------------------------------------------------------------

def _reference_forward(feature, w1, b1, w2, b2, spatial_dim):
    n, c, h, w = feature.shape
    if h != spatial_dim or w != spatial_dim:
        x = _resize_align_corners(feature, spatial_dim, spatial_dim)
    else:
        x = feature
    x = x.reshape(n, c, -1).astype(jnp.float32)
    hdn = jnp.maximum(x @ w1.astype(jnp.float32) + b1.astype(jnp.float32), 0.0)
    gate = jax.nn.sigmoid(hdn @ w2.astype(jnp.float32) + b2.astype(jnp.float32))
    return gate[:, :, :, None].astype(feature.dtype) * feature


if __name__ == "__main__":
    key = jax.random.PRNGKey(0)
    k_feat, k_w1, k_b1, k_w2, k_b2, k_feat2 = jax.random.split(key, 6)

    spatial_dim = 16
    hidden = 512
    in_dim = spatial_dim * spatial_dim

    # Deterministic parameter init (PyTorch-Linear-style uniform bounds).
    bound1 = 1.0 / (in_dim ** 0.5)
    w1 = jax.random.uniform(k_w1, (in_dim, hidden), jnp.float32, -bound1, bound1)
    b1 = jax.random.uniform(k_b1, (hidden,), jnp.float32, -bound1, bound1)
    bound2 = 1.0 / (hidden ** 0.5)
    w2 = jax.random.uniform(k_w2, (hidden, 1), jnp.float32, -bound2, bound2)
    b2 = jax.random.uniform(k_b2, (1,), jnp.float32, -bound2, bound2)

    # 1) No-resize path (H == W == spatial_dim): single-input fused kernel.
    feat_a = jax.random.normal(k_feat, (2, 4, spatial_dim, spatial_dim),
                               jnp.float32)
    out_a = jax.block_until_ready(
        slam_forward(feat_a, w1, b1, w2, b2, spatial_dim=spatial_dim))
    ref_a = _reference_forward(feat_a, w1, b1, w2, b2, spatial_dim)
    assert out_a.shape == feat_a.shape
    assert jnp.allclose(out_a.astype(jnp.float32), ref_a.astype(jnp.float32),
                        atol=1e-4, rtol=1e-4), "no-resize path mismatch"

    # 2) Resize path with the bilinear resize folded into w1_eff (single input).
    feat_b = jax.random.normal(k_feat2, (2, 4, 24, 24), jnp.float32)
    out_b = jax.block_until_ready(
        slam_forward(feat_b, w1, b1, w2, b2, spatial_dim=spatial_dim))
    ref_b = _reference_forward(feat_b, w1, b1, w2, b2, spatial_dim)
    assert jnp.allclose(out_b.astype(jnp.float32), ref_b.astype(jnp.float32),
                        atol=1e-4, rtol=1e-4), "folded-resize path mismatch"

    # 3) Large-HW split kernel (2-D grid + cached gate scratch), forced here at
    #    a small shape so this code path is also exercised end-to-end.
    out_c = jax.block_until_ready(
        slam_forward(feat_b, w1, b1, w2, b2, spatial_dim=spatial_dim,
                     force_split=True, max_tile_cols=128))
    assert jnp.allclose(out_c.astype(jnp.float32), ref_b.astype(jnp.float32),
                        atol=1e-4, rtol=1e-4), "split path mismatch"

    print("KERNEL_OK")
</pallas_src>

<mosaic_0001>
module attributes {stable_mosaic.version = 11 : i64} {
  func.func @_slam_fused_kernel(%arg0: i32, %arg1: memref<8x256xf32, #tpu.memory_space<vmem>>, %arg2: memref<256x512xf32, #tpu.memory_space<vmem>>, %arg3: memref<1x512xf32, #tpu.memory_space<vmem>>, %arg4: memref<1x512xf32, #tpu.memory_space<vmem>>, %arg5: memref<1xf32, #tpu.memory_space<smem>>, %arg6: memref<8x256xf32, #tpu.memory_space<vmem>>) attributes {dimension_semantics = [#tpu.dimension_semantics<parallel>], iteration_bounds = array<i64: 1>, scalar_prefetch = 0 : i64, scratch_operands = 0 : i64, tpu.core_type = #tpu.core_type<tc>, window_params = [{transform_indices = @transform_0, window_bounds = array<i64: 8, 256>}, {pipeline_mode = #tpu.pipeline_mode<synchronous>, transform_indices = @transform_1, window_bounds = array<i64: 256, 512>}, {pipeline_mode = #tpu.pipeline_mode<synchronous>, transform_indices = @transform_2, window_bounds = array<i64: 1, 512>}, {pipeline_mode = #tpu.pipeline_mode<synchronous>, transform_indices = @transform_3, window_bounds = array<i64: 1, 512>}, {transform_indices = @transform_4, window_bounds = array<i64: 1>}, {transform_indices = @transform_5, window_bounds = array<i64: 8, 256>}]} {
    %c0 = arith.constant 0 : index
    %c0_0 = arith.constant 0 : index
    %0 = vector.load %arg1[%c0, %c0_0] : memref<8x256xf32, #tpu.memory_space<vmem>>, vector<8x256xf32>
    %c0_1 = arith.constant 0 : index
    %c0_2 = arith.constant 0 : index
    %1 = vector.load %arg2[%c0_1, %c0_2] : memref<256x512xf32, #tpu.memory_space<vmem>>, vector<256x512xf32>
    %cst = arith.constant dense<0.000000e+00> : vector<8x512xf32>
    %2 = tpu.matmul %0, %1, %cst {dimension_numbers = #tpu.dot_dimension_numbers<[1], [0], [0], [1], [0, 0, 1, 1], [], []>} : vector<8x256xf32>, vector<256x512xf32>, vector<8x512xf32> -> vector<8x512xf32>
    %c0_3 = arith.constant 0 : index
    %c0_4 = arith.constant 0 : index
    %3 = vector.load %arg3[%c0_3, %c0_4] : memref<1x512xf32, #tpu.memory_space<vmem>>, vector<1x512xf32>
    %4 = vector.broadcast %3 : vector<1x512xf32> to vector<8x512xf32>
    %5 = arith.addf %2, %4 : vector<8x512xf32>
    %cst_5 = arith.constant 0.000000e+00 : f32
    %6 = vector.broadcast %cst_5 : f32 to vector<8x512xf32>
    %7 = arith.maximumf %5, %6 : vector<8x512xf32>
    %c0_6 = arith.constant 0 : index
    %c0_7 = arith.constant 0 : index
    %8 = vector.load %arg4[%c0_6, %c0_7] : memref<1x512xf32, #tpu.memory_space<vmem>>, vector<1x512xf32>
    %9 = vector.broadcast %8 : vector<1x512xf32> to vector<8x512xf32>
    %10 = arith.mulf %7, %9 : vector<8x512xf32>
    %cst_8 = arith.constant dense<0.000000e+00> : vector<8xf32>
    %11 = vector.multi_reduction <add>, %10, %cst_8 [1] : vector<8x512xf32> to vector<8xf32>
    %12 = vector.shape_cast %11 : vector<8xf32> to vector<8x1xf32>
    %c0_9 = arith.constant 0 : index
    %13 = memref.load %arg5[%c0_9] : memref<1xf32, #tpu.memory_space<smem>>
    %14 = vector.broadcast %13 : f32 to vector<8x1xf32>
    %15 = arith.addf %12, %14 : vector<8x1xf32>
    %16 = arith.negf %15 : vector<8x1xf32>
    %17 = math.exp %16 : vector<8x1xf32>
    %cst_10 = arith.constant 1.000000e+00 : f32
    %18 = vector.broadcast %cst_10 : f32 to vector<8x1xf32>
    %19 = arith.addf %18, %17 : vector<8x1xf32>
    %20 = arith.divf %18, %19 : vector<8x1xf32>
    %21 = vector.broadcast %20 : vector<8x1xf32> to vector<8x256xf32>
    %22 = arith.mulf %0, %21 : vector<8x256xf32>
    %c0_11 = arith.constant 0 : index
    %c0_12 = arith.constant 0 : index
    %23 = vector.load %arg6[%c0_11, %c0_12] : memref<8x256xf32, #tpu.memory_space<vmem>>, vector<8x256xf32>
    tpu.vector_store %arg6[%c0_11, %c0_12], %22 {strides = array<i32>} : memref<8x256xf32, #tpu.memory_space<vmem>>, vector<8x256xf32>,
    return
  }
  func.func @transform_0(%arg0: i32) -> (i32, i32) {
    %c0_i32 = arith.constant 0 : i32
    %c0_i32_0 = arith.constant 0 : i32
    return %arg0, %c0_i32 : i32, i32
  }
  func.func @transform_1(%arg0: i32) -> (i32, i32) {
    %c0_i32 = arith.constant 0 : i32
    %c0_i32_0 = arith.constant 0 : i32
    %c0_i32_1 = arith.constant 0 : i32
    return %c0_i32, %c0_i32_0 : i32, i32
  }
  func.func @transform_2(%arg0: i32) -> (i32, i32) {
    %c0_i32 = arith.constant 0 : i32
    %c0_i32_0 = arith.constant 0 : i32
    %c0_i32_1 = arith.constant 0 : i32
    return %c0_i32, %c0_i32_0 : i32, i32
  }
  func.func @transform_3(%arg0: i32) -> (i32, i32) {
    %c0_i32 = arith.constant 0 : i32
    %c0_i32_0 = arith.constant 0 : i32
    %c0_i32_1 = arith.constant 0 : i32
    return %c0_i32, %c0_i32_0 : i32, i32
  }
  func.func @transform_4(%arg0: i32) -> i32 {
    %c0_i32 = arith.constant 0 : i32
    %c0_i32_0 = arith.constant 0 : i32
    return %c0_i32 : i32
  }
  func.func @transform_5(%arg0: i32) -> (i32, i32) {
    %c0_i32 = arith.constant 0 : i32
    %c0_i32_0 = arith.constant 0 : i32
    return %arg0, %c0_i32 : i32, i32
  }
}

</mosaic_0001>

<llo_original>
// kernel: slam_forward.1
$region0: #{slam_forward.1}
  #allocation0 [shape = 'u32[]', space=smem, size = 0x4, offset = 0x4, fixed_abs, tag = 'smem constant byte address 0x4 - core index']
  #allocation1 [shape = 'u32[144,128]{1,0:T(1,128)}', space=vmem, size = 0x12000, scoped, tag = 'internal scratch']
  #allocation2 [shape = 'f32[1]{0:T(128)S(6)}', space=smem, size = 0x200, scoped, tag = 'scoped memory for slam_forward.1']
  %s0 = inlined_call_operand.vmem [shape: f32[8,256], index: 0, kind: input, shape index: {}]
  %s1 = inlined_call_operand.hbm [shape: f32[256,512], index: 1, kind: input, shape index: {}]
  %s2 = inlined_call_operand.vmem [shape: f32[1,512], index: 2, kind: input, shape index: {}]
  %s3 = inlined_call_operand.vmem [shape: f32[1,512], index: 3, kind: input, shape index: {}]
  %s4 = inlined_call_operand.<no memory space> [shape: f32[1], index: 4, kind: input, shape index: {}]
  %s5 = inlined_call_operand.vmem [shape: f32[8,256], index: 5, kind: output, shape index: {}]
  %s6 = sld [smem:[#allocation0]]
  $region34: #{slam_forward.1} parent=0
    _
  %s8 = ssub.s32 1, %s6
  %s9 = scalar_select 0, %s8, %s6
  %10 = sst [smem:[#allocation2]] %s4
  $region1: #{slam_forward.1} parent=0
    #allocation3 [shape = 'u8[524288]{0}', space=vmem, size = 0x80000, scoped, tag = 'input window, operand 1, single buffered']
    #allocation4 [shape = 's32[1]{0}', space=sflag, size = 0x4, scoped, tag = 'scoped memory for slam_forward.1']
    %11 = vsyncpa [#allocation4], 0
    // Predicated region
    $region2: #{slam_forward.1} parent=1 // pred_check
      _
    $region3: #{slam_forward.1} parent=1 // pred_check_branch
      %13 = sbr.rel (0) target = $region5
    $region4: #{slam_forward.1} parent=1 // pred_region
      _
    $region5: #{slam_forward.1} parent=1 // pred_fallthru
      _
    // Predicated region
    $region6: #{slam_forward.1} parent=1 // pred_check
      _
    $region7: #{slam_forward.1} parent=1 // pred_check_branch
      %15 = sbr.rel (0) target = $region9
    $region8: #{slam_forward.1} parent=1 // pred_region
      %s17 = ssub.s32 16384, 16384
      %18 = vsyncadd [#allocation4], %s17
      %s19 = sshll.u32 [#allocation3], 4
      %s20 = int_to_ptr.vmem [resolvable:$true] %s19
      %25 = dma.hbm_to_vmem [thread:$0]  %s1, 16384, %s20, [#allocation4], 512, 512, 32
    $region9: #{slam_forward.1} parent=1 // pred_fallthru
      _
    // Predicated region
    $region10: #{slam_forward.1} parent=1 // pred_check
      _
    $region11: #{slam_forward.1} parent=1 // pred_check_branch
      %27 = sbr.rel (0) target = $region13
    $region12: #{slam_forward.1} parent=1 // pred_region
      _
    $region13: #{slam_forward.1} parent=1 // pred_fallthru
      _
    // Predicated region
    $region14: #{slam_forward.1} parent=1 // pred_check
      _
    $region15: #{slam_forward.1} parent=1 // pred_check_branch
      %29 = sbr.rel (0) target = $region17
    $region16: #{slam_forward.1} parent=1 // pred_region
      _
    $region17: #{slam_forward.1} parent=1 // pred_fallthru
      _
    // Predicated region
    $region18: #{slam_forward.1} parent=1 // pred_check
      _
    $region19: #{slam_forward.1} parent=1 // pred_check_branch
      %31 = sbr.rel (0) target = $region21
    $region20: #{slam_forward.1} parent=1 // pred_region
      _
    $region21: #{slam_forward.1} parent=1 // pred_fallthru
      _
    // Predicated region
    $region22: #{slam_forward.1} parent=1 // pred_check
      _
    $region23: #{slam_forward.1} parent=1 // pred_check_branch
      %33 = sbr.rel (0) target = $region25
    $region24: #{slam_forward.1} parent=1 // pred_region
      %34 = dma.done [#allocation4], 16384
    $region25: #{slam_forward.1} parent=1 // pred_fallthru
      _
    %v35 = vld [vmem:[%s0] sm:$0xff]
    %v36 = vld [vmem:[%s0 + $0x8] sm:$0xff]
    %v37 = vld [vmem:[#allocation3] sm:$0xff]
    %v38 = vld [vmem:[#allocation3 + $0x8] sm:$0xff]
    %v39 = vld [vmem:[#allocation3 + $0x10] sm:$0xff]
    %v40 = vld [vmem:[#allocation3 + $0x18] sm:$0xff]
    %v41 = vld [vmem:[#allocation3 + $0x20] sm:$0xff]
    %v42 = vld [vmem:[#allocation3 + $0x28] sm:$0xff]
    %v43 = vld [vmem:[#allocation3 + $0x30] sm:$0xff]
    %v44 = vld [vmem:[#allocation3 + $0x38] sm:$0xff]
    %v45 = vld [vmem:[#allocation3 + $0x40] sm:$0xff]
    %v46 = vld [vmem:[#allocation3 + $0x48] sm:$0xff]
    %v47 = vld [vmem:[#allocation3 + $0x50] sm:$0xff]
    %v48 = vld [vmem:[#allocation3 + $0x58] sm:$0xff]
    %v49 = vld [vmem:[#allocation3 + $0x60] sm:$0xff]
    %v50 = vld [vmem:[#allocation3 + $0x68] sm:$0xff]
    %v51 = vld [vmem:[#allocation3 + $0x70] sm:$0xff]
    %v52 = vld [vmem:[#allocation3 + $0x78] sm:$0xff]
    %v53 = vld [vmem:[#allocation3 + $0x80] sm:$0xff]
    %v54 = vld [vmem:[#allocation3 + $0x88] sm:$0xff]
    %v55 = vld [vmem:[#allocation3 + $0x90] sm:$0xff]
    %v56 = vld [vmem:[#allocation3 + $0x98] sm:$0xff]
    %v57 = vld [vmem:[#allocation3 + $0xa0] sm:$0xff]
    %v58 = vld [vmem:[#allocation3 + $0xa8] sm:$0xff]
    %v59 = vld [vmem:[#allocation3 + $0xb0] sm:$0xff]
    %v60 = vld [vmem:[#allocation3 + $0xb8] sm:$0xff]
    %v61 = vld [vmem:[#allocation3 + $0xc0] sm:$0xff]
    %v62 = vld [vmem:[#allocation3 + $0xc8] sm:$0xff]
    %v63 = vld [vmem:[#allocation3 + $0xd0] sm:$0xff]
    %v64 = vld [vmem:[#allocation3 + $0xd8] sm:$0xff]
    %v65 = vld [vmem:[#allocation3 + $0xe0] sm:$0xff]
    %v66 = vld [vmem:[#allocation3 + $0xe8] sm:$0xff]
    %v67 = vld [vmem:[#allocation3 + $0xf0] sm:$0xff]
    %v68 = vld [vmem:[#allocation3 + $0xf8] sm:$0xff]
    %v69 = vld [vmem:[#allocation3 + $0x100] sm:$0xff]
    %v70 = vld [vmem:[#allocation3 + $0x108] sm:$0xff]
    %v71 = vld [vmem:[#allocation3 + $0x110] sm:$0xff]
    %v72 = vld [vmem:[#allocation3 + $0x118] sm:$0xff]
    %v73 = vld [vmem:[#allocation3 + $0x120] sm:$0xff]
    %v74 = vld [vmem:[#allocation3 + $0x128] sm:$0xff]
    %v75 = vld [vmem:[#allocation3 + $0x130] sm:$0xff]
    %v76 = vld [vmem:[#allocation3 + $0x138] sm:$0xff]
    %v77 = vld [vmem:[#allocation3 + $0x140] sm:$0xff]
    %v78 = vld [vmem:[#allocation3 + $0x148] sm:$0xff]
    %v79 = vld [vmem:[#allocation3 + $0x150] sm:$0xff]
    %v80 = vld [vmem:[#allocation3 + $0x158] sm:$0xff]
    %v81 = vld [vmem:[#allocation3 + $0x160] sm:$0xff]
    %v82 = vld [vmem:[#allocation3 + $0x168] sm:$0xff]
    %v83 = vld [vmem:[#allocation3 + $0x170] sm:$0xff]
    %v84 = vld [vmem:[#allocation3 + $0x178] sm:$0xff]
    %v85 = vld [vmem:[#allocation3 + $0x180] sm:$0xff]
    %v86 = vld [vmem:[#allocation3 + $0x188] sm:$0xff]
    %v87 = vld [vmem:[#allocation3 + $0x190] sm:$0xff]
    %v88 = vld [vmem:[#allocation3 + $0x198] sm:$0xff]
    %v89 = vld [vmem:[#allocation3 + $0x1a0] sm:$0xff]
    %v90 = vld [vmem:[#allocation3 + $0x1a8] sm:$0xff]
    %v91 = vld [vmem:[#allocation3 + $0x1b0] sm:$0xff]
    %v92 = vld [vmem:[#allocation3 + $0x1b8] sm:$0xff]
    %v93 = vld [vmem:[#allocation3 + $0x1c0] sm:$0xff]
    %v94 = vld [vmem:[#allocation3 + $0x1c8] sm:$0xff]
    %v95 = vld [vmem:[#allocation3 + $0x1d0] sm:$0xff]
    %v96 = vld [vmem:[#allocation3 + $0x1d8] sm:$0xff]
    %v97 = vld [vmem:[#allocation3 + $0x1e0] sm:$0xff]
    %v98 = vld [vmem:[#allocation3 + $0x1e8] sm:$0xff]
    %v99 = vld [vmem:[#allocation3 + $0x1f0] sm:$0xff]
    %v100 = vld [vmem:[#allocation3 + $0x1f8] sm:$0xff]
    %v101 = vld [vmem:[#allocation3 + $0x200] sm:$0xff]
    %v102 = vld [vmem:[#allocation3 + $0x208] sm:$0xff]
    %v103 = vld [vmem:[#allocation3 + $0x210] sm:$0xff]
    %v104 = vld [vmem:[#allocation3 + $0x218] sm:$0xff]
    %v105 = vld [vmem:[#allocation3 + $0x220] sm:$0xff]
    %v106 = vld [vmem:[#allocation3 + $0x228] sm:$0xff]
    %v107 = vld [vmem:[#allocation3 + $0x230] sm:$0xff]
    %v108 = vld [vmem:[#allocation3 + $0x238] sm:$0xff]
    %v109 = vld [vmem:[#allocation3 + $0x240] sm:$0xff]
    %v110 = vld [vmem:[#allocation3 + $0x248] sm:$0xff]
    %v111 = vld [vmem:[#allocation3 + $0x250] sm:$0xff]
    %v112 = vld [vmem:[#allocation3 + $0x258] sm:$0xff]
    %v113 = vld [vmem:[#allocation3 + $0x260] sm:$0xff]
    %v114 = vld [vmem:[#allocation3 + $0x268] sm:$0xff]
    %v115 = vld [vmem:[#allocation3 + $0x270] sm:$0xff]
    %v116 = vld [vmem:[#allocation3 + $0x278] sm:$0xff]
    %v117 = vld [vmem:[#allocation3 + $0x280] sm:$0xff]
    %v118 = vld [vmem:[#allocation3 + $0x288] sm:$0xff]
    %v119 = vld [vmem:[#allocation3 + $0x290] sm:$0xff]
    %v120 = vld [vmem:[#allocation3 + $0x298] sm:$0xff]
    %v121 = vld [vmem:[#allocation3 + $0x2a0] sm:$0xff]
    %v122 = vld [vmem:[#allocation3 + $0x2a8] sm:$0xff]
    %v123 = vld [vmem:[#allocation3 + $0x2b0] sm:$0xff]
    %v124 = vld [vmem:[#allocation3 + $0x2b8] sm:$0xff]
    %v125 = vld [vmem:[#allocation3 + $0x2c0] sm:$0xff]
    %v126 = vld [vmem:[#allocation3 + $0x2c8] sm:$0xff]
    %v127 = vld [vmem:[#allocation3 + $0x2d0] sm:$0xff]
    %v128 = vld [vmem:[#allocation3 + $0x2d8] sm:$0xff]
    %v129 = vld [vmem:[#allocation3 + $0x2e0] sm:$0xff]
    %v130 = vld [vmem:[#allocation3 + $0x2e8] sm:$0xff]
    %v131 = vld [vmem:[#allocation3 + $0x2f0] sm:$0xff]
    %v132 = vld [vmem:[#allocation3 + $0x2f8] sm:$0xff]
    %v133 = vld [vmem:[#allocation3 + $0x300] sm:$0xff]
    %v134 = vld [vmem:[#allocation3 + $0x308] sm:$0xff]
    %v135 = vld [vmem:[#allocation3 + $0x310] sm:$0xff]
    %v136 = vld [vmem:[#allocation3 + $0x318] sm:$0xff]
    %v137 = vld [vmem:[#allocation3 + $0x320] sm:$0xff]
    %v138 = vld [vmem:[#allocation3 + $0x328] sm:$0xff]
    %v139 = vld [vmem:[#allocation3 + $0x330] sm:$0xff]
    %v140 = vld [vmem:[#allocation3 + $0x338] sm:$0xff]
    %v141 = vld [vmem:[#allocation3 + $0x340] sm:$0xff]
    %v142 = vld [vmem:[#allocation3 + $0x348] sm:$0xff]
    %v143 = vld [vmem:[#allocation3 + $0x350] sm:$0xff]
    %v144 = vld [vmem:[#allocation3 + $0x358] sm:$0xff]
    %v145 = vld [vmem:[#allocation3 + $0x360] sm:$0xff]
    %v146 = vld [vmem:[#allocation3 + $0x368] sm:$0xff]
    %v147 = vld [vmem:[#allocation3 + $0x370] sm:$0xff]
    %v148 = vld [vmem:[#allocation3 + $0x378] sm:$0xff]
    %v149 = vld [vmem:[#allocation3 + $0x380] sm:$0xff]
    %v150 = vld [vmem:[#allocation3 + $0x388] sm:$0xff]
    %v151 = vld [vmem:[#allocation3 + $0x390] sm:$0xff]
    %v152 = vld [vmem:[#allocation3 + $0x398] sm:$0xff]
    %v153 = vld [vmem:[#allocation3 + $0x3a0] sm:$0xff]
    %v154 = vld [vmem:[#allocation3 + $0x3a8] sm:$0xff]
    %v155 = vld [vmem:[#allocation3 + $0x3b0] sm:$0xff]
    %v156 = vld [vmem:[#allocation3 + $0x3b8] sm:$0xff]
    %v157 = vld [vmem:[#allocation3 + $0x3c0] sm:$0xff]
    %v158 = vld [vmem:[#allocation3 + $0x3c8] sm:$0xff]
    %v159 = vld [vmem:[#allocation3 + $0x3d0] sm:$0xff]
    %v160 = vld [vmem:[#allocation3 + $0x3d8] sm:$0xff]
    %v161 = vld [vmem:[#allocation3 + $0x3e0] sm:$0xff]
    %v162 = vld [vmem:[#allocation3 + $0x3e8] sm:$0xff]
    %v163 = vld [vmem:[#allocation3 + $0x3f0] sm:$0xff]
    %v164 = vld [vmem:[#allocation3 + $0x3f8] sm:$0xff]
    %v165 = vld [vmem:[%s2] sm:$0xf]
    %v167 = vlaneseq
    %v168 = vshrl.u32 %v167, 7
    %v169 = vsub.s32 0, %v168
    %v170 = vrot.slane %v165, %v169
    %v171 = vlaneseq
    %v172 = vshrl.u32 %v171, 7
    %v173 = vsub.s32 1, %v172
    %v174 = vrot.slane %v165, %v173
    %v175 = vlaneseq
    %v176 = vshrl.u32 %v175, 7
    %v177 = vsub.s32 2, %v176
    %v178 = vrot.slane %v165, %v177
    %v179 = vlaneseq
    %v180 = vshrl.u32 %v179, 7
    %v181 = vsub.s32 3, %v180
    %v182 = vrot.slane %v165, %v181
    %187 = vmatprep.subr.mxu0 %v38
    %188 = vmatpush1.msra.mxu0 %v37
    %189 = vmatprep.subr.mxu0 %v42
    %190 = vmatpush1.msra.mxu0 %v41
    %191 = vmatprep.subr.mxu0 %v46
    %192 = vmatpush1.msra.mxu0 %v45
    %193 = vmatprep.subr.mxu0 %v50
    %194 = vmatpush1.msra.mxu0 %v49
    %195 = vmatprep.subr.mxu0 %v54
    %196 = vmatpush1.msra.mxu0 %v53
    %197 = vmatprep.subr.mxu0 %v58
    %198 = vmatpush1.msra.mxu0 %v57
    %199 = vmatprep.subr.mxu0 %v62
    %200 = vmatpush1.msra.mxu0 %v61
    %201 = vmatprep.subr.mxu0 %v66
    %202 = vmatpush1.msra.mxu0 %v65
    %203 = vmatprep.subr.mxu0 %v70
    %204 = vmatpush1.msra.mxu0 %v69
    %205 = vmatprep.subr.mxu0 %v74
    %206 = vmatpush1.msra.mxu0 %v73
    %207 = vmatprep.subr.mxu0 %v78
    %208 = vmatpush1.msra.mxu0 %v77
    %209 = vmatprep.subr.mxu0 %v82
    %210 = vmatpush1.msra.mxu0 %v81
    %211 = vmatprep.subr.mxu0 %v86
    %212 = vmatpush1.msra.mxu0 %v85
    %213 = vmatprep.subr.mxu0 %v90
    %214 = vmatpush1.msra.mxu0 %v89
    %215 = vmatprep.subr.mxu0 %v94
    %216 = vmatpush1.msra.mxu0 %v93
    %217 = vmatprep.subr.mxu0 %v98
    %218 = vmatpush1.msra.mxu0 %v97
    %219 = vmatprep.subr.mxu0 %v102
    %220 = vmatpush1.msra.mxu0 %v101
    %221 = vmatprep.subr.mxu0 %v106
    %222 = vmatpush1.msra.mxu0 %v105
    %223 = vmatprep.subr.mxu0 %v110
    %224 = vmatpush1.msra.mxu0 %v109
    %225 = vmatprep.subr.mxu0 %v114
    %226 = vmatpush1.msra.mxu0 %v113
    %227 = vmatprep.subr.mxu0 %v118
    %228 = vmatpush1.msra.mxu0 %v117
    %229 = vmatprep.subr.mxu0 %v122
    %230 = vmatpush1.msra.mxu0 %v121
    %231 = vmatprep.subr.mxu0 %v126
    %232 = vmatpush1.msra.mxu0 %v125
    %233 = vmatprep.subr.mxu0 %v130
    %234 = vmatpush1.msra.mxu0 %v129
    %235 = vmatprep.subr.mxu0 %v134
    %236 = vmatpush1.msra.mxu0 %v133
    %237 = vmatprep.subr.mxu0 %v138
    %238 = vmatpush1.msra.mxu0 %v137
    %239 = vmatprep.subr.mxu0 %v142
    %240 = vmatpush1.msra.mxu0 %v141
    %241 = vmatprep.subr.mxu0 %v146
    %242 = vmatpush1.msra.mxu0 %v145
    %243 = vmatprep.subr.mxu0 %v150
    %244 = vmatpush1.msra.mxu0 %v149
    %245 = vmatprep.subr.mxu0 %v154
    %246 = vmatpush1.msra.mxu0 %v153
    %247 = vmatprep.subr.mxu0 %v158
    %248 = vmatpush1.msra.mxu0 %v157
    %249 = vmatprep.subr.mxu0 %v162
    %250 = vmatpush1.msra.mxu0 %v161
    %251 = vmatprep.mubr.f32.mxu0 %v36
    %252 = vmatmul.mubr.f32.gmra.mrb[0].mxu0 %v35
    %v253 = vpop.f32.mrb[0].mxu0
    %v254 = vadd.f32 %v170, %v253
    %v255 = vpop.f32.mrb[0].mxu0
    %v256 = vadd.f32 %v174, %v255
    %257 = vdwg.mxu0
    %258 = vmatprep.subr.mxu0 %v40
    %259 = vmatpush1.msra.mxu0 %v39
    %260 = vmatprep.subr.mxu0 %v44
    %261 = vmatpush1.msra.mxu0 %v43
    %262 = vmatprep.subr.mxu0 %v48
    %263 = vmatpush1.msra.mxu0 %v47
    %264 = vmatprep.subr.mxu0 %v52
    %265 = vmatpush1.msra.mxu0 %v51
    %266 = vmatprep.subr.mxu0 %v56
    %267 = vmatpush1.msra.mxu0 %v55
    %268 = vmatprep.subr.mxu0 %v60
    %269 = vmatpush1.msra.mxu0 %v59
    %270 = vmatprep.subr.mxu0 %v64
    %271 = vmatpush1.msra.mxu0 %v63
    %272 = vmatprep.subr.mxu0 %v68
    %273 = vmatpush1.msra.mxu0 %v67
    %274 = vmatprep.subr.mxu0 %v72
    %275 = vmatpush1.msra.mxu0 %v71
    %276 = vmatprep.subr.mxu0 %v76
    %277 = vmatpush1.msra.mxu0 %v75
    %278 = vmatprep.subr.mxu0 %v80
    %279 = vmatpush1.msra.mxu0 %v79
    %280 = vmatprep.subr.mxu0 %v84
    %281 = vmatpush1.msra.mxu0 %v83
    %282 = vmatprep.subr.mxu0 %v88
    %283 = vmatpush1.msra.mxu0 %v87
    %284 = vmatprep.subr.mxu0 %v92
    %285 = vmatpush1.msra.mxu0 %v91
    %286 = vmatprep.subr.mxu0 %v96
    %287 = vmatpush1.msra.mxu0 %v95
    %288 = vmatprep.subr.mxu0 %v100
    %289 = vmatpush1.msra.mxu0 %v99
    %290 = vmatprep.subr.mxu0 %v104
    %291 = vmatpush1.msra.mxu0 %v103
    %292 = vmatprep.subr.mxu0 %v108
    %293 = vmatpush1.msra.mxu0 %v107
    %294 = vmatprep.subr.mxu0 %v112
    %295 = vmatpush1.msra.mxu0 %v111
    %296 = vmatprep.subr.mxu0 %v116
    %297 = vmatpush1.msra.mxu0 %v115
    %298 = vmatprep.subr.mxu0 %v120
    %299 = vmatpush1.msra.mxu0 %v119
    %300 = vmatprep.subr.mxu0 %v124
    %301 = vmatpush1.msra.mxu0 %v123
    %302 = vmatprep.subr.mxu0 %v128
    %303 = vmatpush1.msra.mxu0 %v127
    %304 = vmatprep.subr.mxu0 %v132
    %305 = vmatpush1.msra.mxu0 %v131
    %306 = vmatprep.subr.mxu0 %v136
    %307 = vmatpush1.msra.mxu0 %v135
    %308 = vmatprep.subr.mxu0 %v140
    %309 = vmatpush1.msra.mxu0 %v139
    %310 = vmatprep.subr.mxu0 %v144
    %311 = vmatpush1.msra.mxu0 %v143
    %312 = vmatprep.subr.mxu0 %v148
    %313 = vmatpush1.msra.mxu0 %v147
    %314 = vmatprep.subr.mxu0 %v152
    %315 = vmatpush1.msra.mxu0 %v151
    %316 = vmatprep.subr.mxu0 %v156
    %317 = vmatpush1.msra.mxu0 %v155
    %318 = vmatprep.subr.mxu0 %v160
    %319 = vmatpush1.msra.mxu0 %v159
    %320 = vmatprep.subr.mxu0 %v164
    %321 = vmatpush1.msra.mxu0 %v163
    %322 = vmatprep.mubr.f32.mxu0 %v36
    %323 = vmatmul.mubr.f32.gmra.mrb[0].mxu0 %v35
    %v324 = vpop.f32.mrb[0].mxu0
    %v325 = vadd.f32 %v178, %v324
    %v326 = vpop.f32.mrb[0].mxu0
    %v327 = vadd.f32 %v182, %v326
    %328 = vdwg.mxu0
    %v329 = vmax.f32 %v254, 0.0
    %v330 = vmax.f32 %v256, 0.0
    %v331 = vmax.f32 %v325, 0.0
    %v332 = vmax.f32 %v327, 0.0
    %v333 = vld [vmem:[%s3] sm:$0xf]
    %v335 = vlaneseq
    %v336 = vshrl.u32 %v335, 7
    %v337 = vsub.s32 0, %v336
    %v338 = vrot.slane %v333, %v337
    %v339 = vlaneseq
    %v340 = vshrl.u32 %v339, 7
    %v341 = vsub.s32 1, %v340
    %v342 = vrot.slane %v333, %v341
    %v343 = vlaneseq
    %v344 = vshrl.u32 %v343, 7
    %v345 = vsub.s32 2, %v344
    %v346 = vrot.slane %v333, %v345
    %v347 = vlaneseq
    %v348 = vshrl.u32 %v347, 7
    %v349 = vsub.s32 3, %v348
    %v350 = vrot.slane %v333, %v349
    %v355 = vmul.f32 %v329, %v338
    %v356 = vmul.f32 %v330, %v342
    %v357 = vmul.f32 %v331, %v346
    %v358 = vmul.f32 %v332, %v350
    %v359 = vadd.f32 %v355, %v356
    %v360 = vadd.f32 %v359, %v357
    %v361 = vadd.f32 %v360, %v358
    %362 = vadd.xlane.f32.xlu0 %v361
    %v363 = vpop.xlane.xlu0 %362
    %s364 = sld [smem:[#allocation2]]
    %v365 = vstv %s364
    %v366 = vadd.f32 %v363, %v365
    %v367 = vxor.u32 %v366, 2147483648
    %v368 = vmul.f32 %v367, 1.442695
    %v369 = vpow.pop %v368
    %v370 = vadd.f32 %v369, 1.0
    %v371 = vrcp.pop %v370
    %v372 = vmul.f32 1.0, %v371
    %v373 = vmul.f32 %v35, %v372
    %v374 = vmul.f32 %v36, %v372
    %375 = vst [vmem:[%s5] sm:$0xff] %v373
    %376 = vst [vmem:[%s5 + $0x8] sm:$0xff] %v374
    // Predicated region
    $region26: #{slam_forward.1} parent=1 // pred_check
      _
    $region27: #{slam_forward.1} parent=1 // pred_check_branch
      %378 = sbr.rel (0) target = $region29
    $region28: #{slam_forward.1} parent=1 // pred_region
      _
    $region29: #{slam_forward.1} parent=1 // pred_fallthru
      _
    // Predicated region
    $region30: #{slam_forward.1} parent=1 // pred_check
      _
    $region31: #{slam_forward.1} parent=1 // pred_check_branch
      %380 = sbr.rel (0) target = $region33
    $region32: #{slam_forward.1} parent=1 // pred_region
      _
    $region33: #{slam_forward.1} parent=1 // pred_fallthru
      _
    %381 = vsyncpa [#allocation4], 1

</llo_original>
